<compile_context>
chip_gen: v5e
topology: v5e:2x2
jax: 0.10.0
libtpu: 0.0.40
codegen_flags: <defaults>
</compile_context>

<pallas_src>
import functools
import math

import jax
import jax.numpy as jnp
from jax.experimental import pallas as pl
from jax.experimental.pallas import tpu as pltpu

_VMEM_LIMIT = 32 * 1024 * 1024  # explicit: v5e default scoped limit is only 16 MiB


def _round_up(x, m):
    return ((x + m - 1) // m) * m


# ---------------------------------------------------------------------------
# Pass 1: per-metapath scores -> softmax weights beta (M, 1)
# ---------------------------------------------------------------------------
def _scores_kernel(z_ref, w1_ref, b1_ref, w2_ref, beta_ref, colsum_ref, *,
                   num_m, d, n_true, needs_mask):
    i = pl.program_id(0)
    nt = pl.num_programs(0)
    f32 = jnp.float32

    @pl.when(i == 0)
    def _init():
        colsum_ref[...] = jnp.zeros_like(colsum_ref)

    z = z_ref[...]            # (tile_n, M*D)  bf16
    w1 = w1_ref[...]          # (D, H)         bf16, resident across tiles
    b1 = b1_ref[...]          # (1, H)         f32
    tile_n = z.shape[0]

    if needs_mask:
        row = jax.lax.broadcasted_iota(jnp.int32, (tile_n, 1), 0) + i * tile_n
        valid = (row < n_true).astype(f32)                  # (tile_n, 1)

    for m_idx in range(num_m):
        zm = z[:, m_idx * d:(m_idx + 1) * d]                # (tile_n, D) lane slice
        hm = jnp.tanh(jnp.dot(zm, w1, preferred_element_type=f32) + b1)  # (tile_n, H)
        if needs_mask:
            hm = hm * valid                                 # pad rows contribute nothing
        colsum_ref[m_idx:m_idx + 1, :] = (
            colsum_ref[m_idx:m_idx + 1, :] + jnp.sum(hm, axis=0, keepdims=True))

    @pl.when(i == nt - 1)
    def _finalize():
        # Linear(H, 1, bias=False) as VPU multiply + lane reduce on the accumulated
        # column sums (no width-1 MXU matmul, no (M*N, 1) intermediate).
        w2 = w2_ref[...]                                                  # (1, H) f32
        s = jnp.sum(colsum_ref[...] * w2, axis=-1, keepdims=True) * (1.0 / n_true)  # (M,1)
        s_max = jnp.max(s, axis=0, keepdims=True)
        e = jnp.exp(s - s_max)
        beta_ref[...] = e / jnp.sum(e, axis=0, keepdims=True)             # (M, 1)


# ---------------------------------------------------------------------------
# Pass 2: out_tile = sum_m beta_m * z_m   (independent per node tile -> "parallel")
# ---------------------------------------------------------------------------
def _combine_kernel(beta_ref, z_ref, o_ref, *, num_m, d):
    f32 = jnp.float32
    z = z_ref[...]                                   # (tile_n, M*D) bf16
    beta = beta_ref[...]                             # (M, 1) f32
    acc = beta[0:1, 0:1] * z[:, 0:d].astype(f32)
    for m_idx in range(1, num_m):
        acc = acc + beta[m_idx:m_idx + 1, 0:1] * z[:, m_idx * d:(m_idx + 1) * d].astype(f32)
    o_ref[...] = acc.astype(o_ref.dtype)             # lane-dense (tile_n, D) store


# ---------------------------------------------------------------------------
# Wrapper
# ---------------------------------------------------------------------------
def semantic_attention(params, z, *, tile_n=512):
    """z: (N, M, D) metapath-stacked node embeddings (ideally already bf16)."""
    n, m, d = z.shape
    h = params['W1'].shape[1]
    f32 = jnp.float32

    if z.dtype != jnp.bfloat16:
        # Supply bf16 z upstream to skip this cast entirely.
        z = z.astype(jnp.bfloat16)

    # Free, layout-preserving view: fold the metapath axis onto the lane axis.
    z2 = z.reshape(n, m * d)

    tile_n = max(8, min(_round_up(n, 8), _round_up(tile_n, 8)))
    n_pad = _round_up(n, tile_n)
    if n_pad != n:
        z2 = jnp.pad(z2, ((0, n_pad - n), (0, 0)))   # pad rows are masked out of scores
    num_tiles = n_pad // tile_n

    # ---- pass 1: beta -------------------------------------------------------
    beta = pl.pallas_call(
        functools.partial(_scores_kernel, num_m=m, d=d, n_true=n,
                          needs_mask=(n_pad != n)),
        out_shape=jax.ShapeDtypeStruct((m, 1), f32),
        grid=(num_tiles,),
        in_specs=[
            pl.BlockSpec((tile_n, m * d), lambda i: (i, 0)),
            pl.BlockSpec((d, h), lambda i: (0, 0)),   # weights DMA'd once, resident
            pl.BlockSpec((1, h), lambda i: (0, 0)),
            pl.BlockSpec((1, h), lambda i: (0, 0)),
        ],
        out_specs=pl.BlockSpec((m, 1), lambda i: (0, 0)),
        scratch_shapes=[pltpu.VMEM((m, h), f32)],
        compiler_params=pltpu.CompilerParams(
            dimension_semantics=("arbitrary",),       # accumulates across tiles
            vmem_limit_bytes=_VMEM_LIMIT),
    )(z2, params['W1'], params['b1'], params['w2_row'])

    # ---- pass 2: weighted combine ------------------------------------------
    out = pl.pallas_call(
        functools.partial(_combine_kernel, num_m=m, d=d),
        out_shape=jax.ShapeDtypeStruct((n_pad, d), f32),
        grid=(num_tiles,),
        in_specs=[
            pl.BlockSpec((m, 1), lambda i: (0, 0)),
            pl.BlockSpec((tile_n, m * d), lambda i: (i, 0)),
        ],
        out_specs=pl.BlockSpec((tile_n, d), lambda i: (i, 0)),
        compiler_params=pltpu.CompilerParams(
            dimension_semantics=("parallel",),        # both TCs on v7x
            vmem_limit_bytes=_VMEM_LIMIT),
    )(beta, z2)

    return out if n_pad == n else out[:n]


# ---------------------------------------------------------------------------
# Params (mirror nn.Linear default init; W1 stored transposed & bf16, W2 as a row)
# ---------------------------------------------------------------------------
def init_params(key, in_size, hidden_size=128):
    k1, k2, k3 = jax.random.split(key, 3)
    lim1 = 1.0 / math.sqrt(in_size)
    lim2 = 1.0 / math.sqrt(hidden_size)
    return {
        'W1': jax.random.uniform(k1, (in_size, hidden_size), jnp.float32,
                                 -lim1, lim1).astype(jnp.bfloat16),
        'b1': jax.random.uniform(k2, (1, hidden_size), jnp.float32, -lim1, lim1),
        'w2_row': jax.random.uniform(k3, (1, hidden_size), jnp.float32, -lim2, lim2),
    }


# Pure-JAX f32 reference replicating the torch forward (for a sanity check).
def semantic_attention_ref(params, z):
    w1 = params['W1'].astype(jnp.float32)
    h = jnp.tanh(jnp.einsum('nmd,dh->nmh', z, w1) + params['b1'][0])
    s = jnp.einsum('nmh,h->nm', h, params['w2_row'][0])        # (N, M)
    w = jnp.mean(s, axis=0)                                    # (M,)
    beta = jax.nn.softmax(w, axis=0)                           # (M,)
    return jnp.sum(beta[None, :, None] * z, axis=1)            # (N, D)


if __name__ == "__main__":
    # 300 nodes (exercises padding + masking), 3 metapaths, in_size=128, hidden=128
    N, M, D, H = 300, 3, 128, 128

    key = jax.random.PRNGKey(0)
    kp, kz = jax.random.split(key)
    params = init_params(kp, D, H)
    z_bf16 = jax.random.normal(kz, (N, M, D), jnp.float32).astype(jnp.bfloat16)

    out = semantic_attention(params, z_bf16, tile_n=128)   # 3 node tiles
    jax.block_until_ready(out)

    ref = semantic_attention_ref(params, z_bf16.astype(jnp.float32))
    assert out.shape == (N, D)
    assert bool(jnp.all(jnp.isfinite(out)))
    err = float(jnp.max(jnp.abs(out - ref)))
    assert bool(jnp.allclose(out, ref, atol=2e-2, rtol=2e-2)), err
    print("KERNEL_OK")
</pallas_src>

<mosaic_0001>
module attributes {stable_mosaic.version = 11 : i64} {
  func.func @_scores_kernel(%arg0: i32, %arg1: memref<128x384xbf16, #tpu.memory_space<vmem>>, %arg2: memref<128x128xbf16, #tpu.memory_space<vmem>>, %arg3: memref<1x128xf32, #tpu.memory_space<vmem>>, %arg4: memref<1x128xf32, #tpu.memory_space<vmem>>, %arg5: memref<3x1xf32, #tpu.memory_space<vmem>>, %arg6: memref<3x128xf32, #tpu.memory_space<vmem>>) attributes {dimension_semantics = [#tpu.dimension_semantics<arbitrary>], iteration_bounds = array<i64: 3>, scalar_prefetch = 0 : i64, scratch_operands = 1 : i64, tpu.core_type = #tpu.core_type<tc>, window_params = [{transform_indices = @transform_0, window_bounds = array<i64: 128, 384>}, {pipeline_mode = #tpu.pipeline_mode<synchronous>, transform_indices = @transform_1, window_bounds = array<i64: 128, 128>}, {pipeline_mode = #tpu.pipeline_mode<synchronous>, transform_indices = @transform_2, window_bounds = array<i64: 1, 128>}, {pipeline_mode = #tpu.pipeline_mode<synchronous>, transform_indices = @transform_3, window_bounds = array<i64: 1, 128>}, {pipeline_mode = #tpu.pipeline_mode<synchronous>, transform_indices = @transform_4, window_bounds = array<i64: 3, 1>}]} {
    %c0_i32 = arith.constant 0 : i32
    %0 = arith.cmpi eq, %arg0, %c0_i32 : i32
    %1 = arith.extui %0 : i1 to i32
    %c0_i32_0 = arith.constant 0 : i32
    %2 = arith.cmpi ne, %1, %c0_i32_0 : i32
    scf.if %2 {
      %cst_22 = arith.constant 0.000000e+00 : f32
      %53 = vector.broadcast %cst_22 : f32 to vector<3x128xf32>
      %c0_23 = arith.constant 0 : index
      %c0_24 = arith.constant 0 : index
      %54 = vector.load %arg6[%c0_23, %c0_24] : memref<3x128xf32, #tpu.memory_space<vmem>>, vector<3x128xf32>
      tpu.vector_store %arg6[%c0_23, %c0_24], %53 {strides = array<i32>} : memref<3x128xf32, #tpu.memory_space<vmem>>, vector<3x128xf32>,
    } else {
    }
    %c0 = arith.constant 0 : index
    %c0_1 = arith.constant 0 : index
    %3 = vector.load %arg1[%c0, %c0_1] : memref<128x384xbf16, #tpu.memory_space<vmem>>, vector<128x384xbf16>
    %c0_2 = arith.constant 0 : index
    %c0_3 = arith.constant 0 : index
    %4 = vector.load %arg2[%c0_2, %c0_3] : memref<128x128xbf16, #tpu.memory_space<vmem>>, vector<128x128xbf16>
    %c0_4 = arith.constant 0 : index
    %c0_5 = arith.constant 0 : index
    %5 = vector.load %arg3[%c0_4, %c0_5] : memref<1x128xf32, #tpu.memory_space<vmem>>, vector<1x128xf32>
    %6 = tpu.iota {dimensions = array<i32: 0>} : vector<128x1xi32>
    %c128_i32 = arith.constant 128 : i32
    %7 = arith.muli %arg0, %c128_i32 : i32
    %8 = vector.broadcast %7 : i32 to vector<128x1xi32>
    %9 = arith.addi %6, %8 : vector<128x1xi32>
    %c300_i32 = arith.constant 300 : i32
    %10 = vector.broadcast %c300_i32 : i32 to vector<128x1xi32>
    %11 = arith.cmpi slt, %9, %10 : vector<128x1xi32>
    %12 = arith.extui %11 : vector<128x1xi1> to vector<128x1xi32>
    %13 = arith.sitofp %12 : vector<128x1xi32> to vector<128x1xf32>
    %14 = vector.extract_strided_slice %3 {offsets = [0, 0], sizes = [128, 128], strides = [1, 1]} : vector<128x384xbf16> to vector<128x128xbf16>
    %cst = arith.constant dense<0.000000e+00> : vector<128x128xf32>
    %15 = tpu.matmul %14, %4, %cst {dimension_numbers = #tpu.dot_dimension_numbers<[1], [0], [0], [1], [0, 0, 1, 1], [], []>} : vector<128x128xbf16>, vector<128x128xbf16>, vector<128x128xf32> -> vector<128x128xf32>
    %16 = vector.broadcast %5 : vector<1x128xf32> to vector<128x128xf32>
    %17 = arith.addf %15, %16 : vector<128x128xf32>
    %18 = math.tanh %17 : vector<128x128xf32>
    %19 = vector.broadcast %13 : vector<128x1xf32> to vector<128x128xf32>
    %20 = arith.mulf %18, %19 : vector<128x128xf32>
    %c0_6 = arith.constant 0 : index
    %c0_7 = arith.constant 0 : index
    %21 = vector.load %arg6[%c0_6, %c0_7] : memref<3x128xf32, #tpu.memory_space<vmem>>, vector<1x128xf32>
    %cst_8 = arith.constant dense<0.000000e+00> : vector<128xf32>
    %22 = vector.multi_reduction <add>, %20, %cst_8 [0] : vector<128x128xf32> to vector<128xf32>
    %23 = vector.shape_cast %22 : vector<128xf32> to vector<1x128xf32>
    %24 = arith.addf %21, %23 : vector<1x128xf32>
    %c0_9 = arith.constant 0 : index
    %c0_10 = arith.constant 0 : index
    %25 = vector.load %arg6[%c0_9, %c0_10] : memref<3x128xf32, #tpu.memory_space<vmem>>, vector<1x128xf32>
    tpu.vector_store %arg6[%c0_9, %c0_10], %24 {strides = array<i32>} : memref<3x128xf32, #tpu.memory_space<vmem>>, vector<1x128xf32>,
    %26 = vector.extract_strided_slice %3 {offsets = [0, 128], sizes = [128, 128], strides = [1, 1]} : vector<128x384xbf16> to vector<128x128xbf16>
    %cst_11 = arith.constant dense<0.000000e+00> : vector<128x128xf32>
    %27 = tpu.matmul %26, %4, %cst_11 {dimension_numbers = #tpu.dot_dimension_numbers<[1], [0], [0], [1], [0, 0, 1, 1], [], []>} : vector<128x128xbf16>, vector<128x128xbf16>, vector<128x128xf32> -> vector<128x128xf32>
    %28 = vector.broadcast %5 : vector<1x128xf32> to vector<128x128xf32>
    %29 = arith.addf %27, %28 : vector<128x128xf32>
    %30 = math.tanh %29 : vector<128x128xf32>
    %31 = vector.broadcast %13 : vector<128x1xf32> to vector<128x128xf32>
    %32 = arith.mulf %30, %31 : vector<128x128xf32>
    %c1 = arith.constant 1 : index
    %c0_12 = arith.constant 0 : index
    %33 = vector.load %arg6[%c1, %c0_12] : memref<3x128xf32, #tpu.memory_space<vmem>>, vector<1x128xf32>
    %cst_13 = arith.constant dense<0.000000e+00> : vector<128xf32>
    %34 = vector.multi_reduction <add>, %32, %cst_13 [0] : vector<128x128xf32> to vector<128xf32>
    %35 = vector.shape_cast %34 : vector<128xf32> to vector<1x128xf32>
    %36 = arith.addf %33, %35 : vector<1x128xf32>
    %c1_14 = arith.constant 1 : index
    %c0_15 = arith.constant 0 : index
    %37 = vector.load %arg6[%c1_14, %c0_15] : memref<3x128xf32, #tpu.memory_space<vmem>>, vector<1x128xf32>
    tpu.vector_store %arg6[%c1_14, %c0_15], %36 {strides = array<i32>} : memref<3x128xf32, #tpu.memory_space<vmem>>, vector<1x128xf32>,
    %38 = vector.extract_strided_slice %3 {offsets = [0, 256], sizes = [128, 128], strides = [1, 1]} : vector<128x384xbf16> to vector<128x128xbf16>
    %cst_16 = arith.constant dense<0.000000e+00> : vector<128x128xf32>
    %39 = tpu.matmul %38, %4, %cst_16 {dimension_numbers = #tpu.dot_dimension_numbers<[1], [0], [0], [1], [0, 0, 1, 1], [], []>} : vector<128x128xbf16>, vector<128x128xbf16>, vector<128x128xf32> -> vector<128x128xf32>
    %40 = vector.broadcast %5 : vector<1x128xf32> to vector<128x128xf32>
    %41 = arith.addf %39, %40 : vector<128x128xf32>
    %42 = math.tanh %41 : vector<128x128xf32>
    %43 = vector.broadcast %13 : vector<128x1xf32> to vector<128x128xf32>
    %44 = arith.mulf %42, %43 : vector<128x128xf32>
    %c2 = arith.constant 2 : index
    %c0_17 = arith.constant 0 : index
    %45 = vector.load %arg6[%c2, %c0_17] : memref<3x128xf32, #tpu.memory_space<vmem>>, vector<1x128xf32>
    %cst_18 = arith.constant dense<0.000000e+00> : vector<128xf32>
    %46 = vector.multi_reduction <add>, %44, %cst_18 [0] : vector<128x128xf32> to vector<128xf32>
    %47 = vector.shape_cast %46 : vector<128xf32> to vector<1x128xf32>
    %48 = arith.addf %45, %47 : vector<1x128xf32>
    %c2_19 = arith.constant 2 : index
    %c0_20 = arith.constant 0 : index
    %49 = vector.load %arg6[%c2_19, %c0_20] : memref<3x128xf32, #tpu.memory_space<vmem>>, vector<1x128xf32>
    tpu.vector_store %arg6[%c2_19, %c0_20], %48 {strides = array<i32>} : memref<3x128xf32, #tpu.memory_space<vmem>>, vector<1x128xf32>,
    %c2_i32 = arith.constant 2 : i32
    %50 = arith.cmpi eq, %arg0, %c2_i32 : i32
    %51 = arith.extui %50 : i1 to i32
    %c0_i32_21 = arith.constant 0 : i32
    %52 = arith.cmpi ne, %51, %c0_i32_21 : i32
    scf.if %52 {
      %c0_22 = arith.constant 0 : index
      %c0_23 = arith.constant 0 : index
      %53 = vector.load %arg4[%c0_22, %c0_23] : memref<1x128xf32, #tpu.memory_space<vmem>>, vector<1x128xf32>
      %c0_24 = arith.constant 0 : index
      %c0_25 = arith.constant 0 : index
      %54 = vector.load %arg6[%c0_24, %c0_25] : memref<3x128xf32, #tpu.memory_space<vmem>>, vector<3x128xf32>
      %55 = vector.broadcast %53 : vector<1x128xf32> to vector<3x128xf32>
      %56 = arith.mulf %54, %55 : vector<3x128xf32>
      %cst_26 = arith.constant dense<0.000000e+00> : vector<3xf32>
      %57 = vector.multi_reduction <add>, %56, %cst_26 [1] : vector<3x128xf32> to vector<3xf32>
      %58 = vector.shape_cast %57 : vector<3xf32> to vector<3x1xf32>
      %cst_27 = arith.constant 0.00333333341 : f32
      %59 = vector.broadcast %cst_27 : f32 to vector<3x1xf32>
      %60 = arith.mulf %58, %59 : vector<3x1xf32>
      %cst_28 = arith.constant dense<0xFF800000> : vector<1xf32>
      %61 = vector.multi_reduction <maximumf>, %60, %cst_28 [0] : vector<3x1xf32> to vector<1xf32>
      %62 = vector.shape_cast %61 : vector<1xf32> to vector<1x1xf32>
      %63 = vector.broadcast %62 : vector<1x1xf32> to vector<3x1xf32>
      %64 = arith.subf %60, %63 : vector<3x1xf32>
      %65 = math.exp %64 : vector<3x1xf32>
      %cst_29 = arith.constant dense<0.000000e+00> : vector<1xf32>
      %66 = vector.multi_reduction <add>, %65, %cst_29 [0] : vector<3x1xf32> to vector<1xf32>
      %67 = vector.shape_cast %66 : vector<1xf32> to vector<1x1xf32>
      %68 = vector.broadcast %67 : vector<1x1xf32> to vector<3x1xf32>
      %69 = arith.divf %65, %68 : vector<3x1xf32>
      %c0_30 = arith.constant 0 : index
      %c0_31 = arith.constant 0 : index
      %70 = vector.load %arg5[%c0_30, %c0_31] : memref<3x1xf32, #tpu.memory_space<vmem>>, vector<3x1xf32>
      tpu.vector_store %arg5[%c0_30, %c0_31], %69 {strides = array<i32>} : memref<3x1xf32, #tpu.memory_space<vmem>>, vector<3x1xf32>,
    } else {
    }
    return
  }
  func.func @transform_0(%arg0: i32) -> (i32, i32) {
    %c0_i32 = arith.constant 0 : i32
    %c0_i32_0 = arith.constant 0 : i32
    return %arg0, %c0_i32 : i32, i32
  }
  func.func @transform_1(%arg0: i32) -> (i32, i32) {
    %c0_i32 = arith.constant 0 : i32
    %c0_i32_0 = arith.constant 0 : i32
    %c0_i32_1 = arith.constant 0 : i32
    return %c0_i32, %c0_i32_0 : i32, i32
  }
  func.func @transform_2(%arg0: i32) -> (i32, i32) {
    %c0_i32 = arith.constant 0 : i32
    %c0_i32_0 = arith.constant 0 : i32
    %c0_i32_1 = arith.constant 0 : i32
    return %c0_i32, %c0_i32_0 : i32, i32
  }
  func.func @transform_3(%arg0: i32) -> (i32, i32) {
    %c0_i32 = arith.constant 0 : i32
    %c0_i32_0 = arith.constant 0 : i32
    %c0_i32_1 = arith.constant 0 : i32
    return %c0_i32, %c0_i32_0 : i32, i32
  }
  func.func @transform_4(%arg0: i32) -> (i32, i32) {
    %c0_i32 = arith.constant 0 : i32
    %c0_i32_0 = arith.constant 0 : i32
    %c0_i32_1 = arith.constant 0 : i32
    return %c0_i32, %c0_i32_0 : i32, i32
  }
}

</mosaic_0001>

<llo_original>
// kernel: tpu_custom_call.1
$region0: #{tpu_custom_call.1}
  #allocation0 [shape = 'u32[]', space=smem, size = 0x4, offset = 0x4, fixed_abs, tag = 'smem constant byte address 0x4 - core index']
  #allocation1 [shape = 'u32[72,128]{1,0:T(1,128)}', space=vmem, size = 0x9000, scoped, tag = 'internal scratch']
  #allocation2 [shape = 'f32[3,128]{1,0:T(4,128)}', space=vmem, size = 0x800, scoped, tag = 'scratch operand']
  %s0 = inlined_call_operand.hbm [shape: bf16[384,384], index: 0, kind: input, shape index: {}]
  %s1 = inlined_call_operand.hbm [shape: bf16[128,128], index: 1, kind: input, shape index: {}]
  %s2 = inlined_call_operand.vmem [shape: f32[1,128], index: 2, kind: input, shape index: {}]
  %s3 = inlined_call_operand.vmem [shape: f32[1,128], index: 3, kind: input, shape index: {}]
  %s4 = inlined_call_operand.vmem [shape: f32[3,1], index: 4, kind: output, shape index: {}]
  %s5 = sld [smem:[#allocation0]]
  $region65: #{tpu_custom_call.1} parent=0
    _
  %s7 = ssub.s32 1, %s5
  %s8 = scalar_select 0, %s7, %s5
  $region1: #{tpu_custom_call.1} parent=0
    #allocation3 [shape = 'u8[196608]{0}', space=vmem, size = 0x30000, scoped, tag = 'input window, operand 0']
    #allocation4 [shape = 's32[2]{0}', space=sflag, size = 0x8, scoped, tag = 'scoped memory for tpu_custom_call.1']
    #allocation5 [shape = 'u8[32768]{0}', space=vmem, size = 0x8000, scoped, tag = 'input window, operand 1, single buffered']
    #allocation6 [shape = 's32[1]{0}', space=sflag, size = 0x4, scoped, tag = 'scoped memory for tpu_custom_call.1']
    %9 = vsyncpa [#allocation4], 0
    %s10 = scalar_lea.sflag [#allocation4], 1
    %11 = vsyncpa %s10, 0
    %12 = vsyncpa [#allocation6], 0
    loop: start=0, step=1, limit=5
    $region2: #{tpu_custom_call.1} parent=1 // loop_pre_header
      _
    $region3: #{tpu_custom_call.1} parent=1 // loop_header
      %s14 = sphi 0, %s18
      %p15 = scmp.ge.s32.totalorder %s14, 5
      %s24 = sphi 0, %s26
      %s27 = sphi 0, %s24
      %s28 = sphi 0, %s27
      %s44 = sphi 0, %s28
      %s48 = sphi 0, %s48
      %s50 = sphi 0, %s48
      %s51 = sphi 0, %s50
      %s65 = sphi 0, %s51
      %s69 = sphi 0, %s69
      %s71 = sphi 0, %s69
      %s72 = sphi 0, %s71
      %s86 = sphi 0, %s72
      %s90 = sphi 0, %s90
      %s92 = sphi 0, %s90
      %s93 = sphi 0, %s92
      %s107 = sphi 0, %s93
      %s111 = sphi 0, %s111
      %s113 = sphi 0, %s111
      %s114 = sphi 0, %s113
      %s128 = sphi 0, %s114
    $region4: #{tpu_custom_call.1} parent=1 // loop_header_branch
      %17 = sbr.rel (%p15) target = $region8
    $region5: #{tpu_custom_call.1} parent=1 // loop_body
      %s19 = ssub.s32 %s14, 1
      %s20 = ssub.s32 %s14, 2
      %s21 = sadd.s32 %s14, 1
      %s22 = ssub.s32 %s14, %s21
      %p23 = scmp.eq.s32.totalorder %s22, 0
      %s25 = sadd.s32 %s24, 1
      %s26 = scalar_select %p23, %s24, %s25
      %p29 = pneg %p23
      %p30 = scmp.eq.s32.totalorder %s14, 2
      %p31 = por %p29, %p30
      %p32 = scmp.ne.s32.totalorder %s24, %s27
      %p33 = scmp.eq.s32.totalorder %s14, 0
      %p34 = por %p32, %p33
      %p35 = scmp.ne.s32.totalorder %s24, %s27
      %p36 = scmp.eq.s32.totalorder %s19, 2
      %p37 = por %p35, %p36
      %p38 = scmp.ne.s32.totalorder %s27, %s28
      %p39 = scmp.eq.s32.totalorder %s19, 0
      %p40 = por %p38, %p39
      %p41 = scmp.ne.s32.totalorder %s27, %s28
      %p42 = scmp.eq.s32.totalorder %s20, 2
      %p43 = por %p41, %p42
      %p45 = scmp.ne.s32.totalorder %s28, %s44
      %p46 = scmp.eq.s32.totalorder %s20, 0
      %p47 = por %p45, %p46
      %s49 = sadd.s32 %s48, 1
      %p52 = scmp.eq.s32.totalorder %s14, 2
      %p53 = scmp.ne.s32.totalorder %s48, %s50
      %p54 = scmp.eq.s32.totalorder %s14, 0
      %p55 = por %p53, %p54
      %p56 = scmp.ne.s32.totalorder %s48, %s50
      %p57 = scmp.eq.s32.totalorder %s19, 2
      %p58 = por %p56, %p57
      %p59 = scmp.ne.s32.totalorder %s50, %s51
      %p60 = scmp.eq.s32.totalorder %s19, 0
      %p61 = por %p59, %p60
      %p62 = scmp.ne.s32.totalorder %s50, %s51
      %p63 = scmp.eq.s32.totalorder %s20, 2
      %p64 = por %p62, %p63
      %p66 = scmp.ne.s32.totalorder %s51, %s65
      %p67 = scmp.eq.s32.totalorder %s20, 0
      %p68 = por %p66, %p67
      %s70 = sadd.s32 %s69, 1
      %p73 = scmp.eq.s32.totalorder %s14, 2
      %p74 = scmp.ne.s32.totalorder %s69, %s71
      %p75 = scmp.eq.s32.totalorder %s14, 0
      %p76 = por %p74, %p75
      %p77 = scmp.ne.s32.totalorder %s69, %s71
      %p78 = scmp.eq.s32.totalorder %s19, 2
      %p79 = por %p77, %p78
      %p80 = scmp.ne.s32.totalorder %s71, %s72
      %p81 = scmp.eq.s32.totalorder %s19, 0
      %p82 = por %p80, %p81
      %p83 = scmp.ne.s32.totalorder %s71, %s72
      %p84 = scmp.eq.s32.totalorder %s20, 2
      %p85 = por %p83, %p84
      %p87 = scmp.ne.s32.totalorder %s72, %s86
      %p88 = scmp.eq.s32.totalorder %s20, 0
      %p89 = por %p87, %p88
      %s91 = sadd.s32 %s90, 1
      %p94 = scmp.eq.s32.totalorder %s14, 2
      %p95 = scmp.ne.s32.totalorder %s90, %s92
      %p96 = scmp.eq.s32.totalorder %s14, 0
      %p97 = por %p95, %p96
      %p98 = scmp.ne.s32.totalorder %s90, %s92
      %p99 = scmp.eq.s32.totalorder %s19, 2
      %p100 = por %p98, %p99
      %p101 = scmp.ne.s32.totalorder %s92, %s93
      %p102 = scmp.eq.s32.totalorder %s19, 0
      %p103 = por %p101, %p102
      %p104 = scmp.ne.s32.totalorder %s92, %s93
      %p105 = scmp.eq.s32.totalorder %s20, 2
      %p106 = por %p104, %p105
      %p108 = scmp.ne.s32.totalorder %s93, %s107
      %p109 = scmp.eq.s32.totalorder %s20, 0
      %p110 = por %p108, %p109
      %s112 = sadd.s32 %s111, 1
      %p115 = scmp.eq.s32.totalorder %s14, 2
      %p116 = scmp.ne.s32.totalorder %s111, %s113
      %p117 = scmp.eq.s32.totalorder %s14, 0
      %p118 = por %p116, %p117
      %p119 = scmp.ne.s32.totalorder %s111, %s113
      %p120 = scmp.eq.s32.totalorder %s19, 2
      %p121 = por %p119, %p120
      %p122 = scmp.ne.s32.totalorder %s113, %s114
      %p123 = scmp.eq.s32.totalorder %s19, 0
      %p124 = por %p122, %p123
      %p125 = scmp.ne.s32.totalorder %s113, %s114
      %p126 = scmp.eq.s32.totalorder %s20, 2
      %p127 = por %p125, %p126
      %p129 = scmp.ne.s32.totalorder %s114, %s128
      %p130 = scmp.eq.s32.totalorder %s20, 0
      %p131 = por %p129, %p130
      %p132 = scmp.le.s32.totalorder 1, %s14
      %p133 = scmp.lt.s32.totalorder %s14, 4
      %p134 = pnand %p132, %p133
      %p135 = pneg %p134
      // Predicated region
      $region9: #{tpu_custom_call.1} parent=5 // pred_check
        _
      $region10: #{tpu_custom_call.1} parent=5 // pred_check_branch
        %137 = sbr.rel (%p134) target = $region12
      $region11: #{tpu_custom_call.1} parent=5 // pred_region
        %s138 = ssub.s32 %s14, 1
        // Predicated region
        $region13: #{tpu_custom_call.1} parent=11 // pred_check
          %p139 = pneg %p61
        $region14: #{tpu_custom_call.1} parent=11 // pred_check_branch
          %141 = sbr.rel (%p139) target = $region16
        $region15: #{tpu_custom_call.1} parent=11 // pred_region
          %143 = vsyncadd [#allocation6], 0
          %s144 = sshll.u32 %s1, 4
          %s145 = int_to_ptr.hbm [resolvable:$true] %s144
          %s146 = sshll.u32 [#allocation5], 4
          %s147 = int_to_ptr.vmem [resolvable:$true] %s146
          %152 = dma.hbm_to_vmem [thread:$0]  %s145, 1024, %s147, [#allocation6], 64, 64, 4
        $region16: #{tpu_custom_call.1} parent=11 // pred_fallthru
          _
        // Predicated region
        $region17: #{tpu_custom_call.1} parent=11 // pred_check
          %p153 = pneg %p82
        $region18: #{tpu_custom_call.1} parent=11 // pred_check_branch
          %155 = sbr.rel (%p153) target = $region20
        $region19: #{tpu_custom_call.1} parent=11 // pred_region
          _
        $region20: #{tpu_custom_call.1} parent=11 // pred_fallthru
          _
        // Predicated region
        $region21: #{tpu_custom_call.1} parent=11 // pred_check
          %p156 = pneg %p103
        $region22: #{tpu_custom_call.1} parent=11 // pred_check_branch
          %158 = sbr.rel (%p156) target = $region24
        $region23: #{tpu_custom_call.1} parent=11 // pred_region
          _
        $region24: #{tpu_custom_call.1} parent=11 // pred_fallthru
          _
      $region12: #{tpu_custom_call.1} parent=5 // pred_fallthru
        _
      %p159 = scmp.lt.s32.totalorder %s14, 3
      // Predicated region
      $region25: #{tpu_custom_call.1} parent=5 // pred_check
        %p160 = pneg %p159
      $region26: #{tpu_custom_call.1} parent=5 // pred_check_branch
        %162 = sbr.rel (%p160) target = $region28
      $region27: #{tpu_custom_call.1} parent=5 // pred_region
        // Predicated region
        $region29: #{tpu_custom_call.1} parent=27 // pred_check
          %p163 = pneg %p34
        $region30: #{tpu_custom_call.1} parent=27 // pred_check_branch
          %165 = sbr.rel (%p163) target = $region32
        $region31: #{tpu_custom_call.1} parent=27 // pred_region
          %s166 = sand.u32 %s24, 1
          %s167 = scalar_lea.sflag [#allocation4], %s166
          %s168 = sand.u32 %s24, 1
          %s169 = smul.addr %s168, 192
          %s170 = scalar_lea.vmem [#allocation3], %s169
          %s171 = smul.u32 16, %s14
          %173 = vsyncadd %s167, 0
          %s174 = smul.addr %s171, 3
          %s175 = smul.addr %s174, 4
          %s176 = scalar_lea.hbm %s0, %s175
          %s177 = sshll.u32 %s176, 4
          %s178 = int_to_ptr.hbm [resolvable:$true] %s177
          %s179 = sshll.u32 %s170, 4
          %s180 = int_to_ptr.vmem [resolvable:$true] %s179
          %185 = dma.hbm_to_vmem [thread:$0]  %s178, 3072, %s180, %s167, 192, 192, 12
        $region32: #{tpu_custom_call.1} parent=27 // pred_fallthru
          _
      $region28: #{tpu_custom_call.1} parent=5 // pred_fallthru
        _
      %p186 = scmp.le.s32.totalorder 1, %s14
      %p187 = scmp.lt.s32.totalorder %s14, 4
      %p188 = pnand %p186, %p187
      %p189 = pneg %p188
      // Predicated region
      $region33: #{tpu_custom_call.1} parent=5 // pred_check
        _
      $region34: #{tpu_custom_call.1} parent=5 // pred_check_branch
        %191 = sbr.rel (%p188) target = $region36
      $region35: #{tpu_custom_call.1} parent=5 // pred_region
        %s192 = ssub.s32 %s14, 1
        %s193 = sand.u32 %s27, 1
        %s194 = scalar_lea.sflag [#allocation4], %s193
        %s195 = sand.u32 %s27, 1
        %s196 = smul.addr %s195, 192
        %s197 = scalar_lea.vmem [#allocation3], %s196
        // Predicated region
        $region37: #{tpu_custom_call.1} parent=35 // pred_check
          %p198 = pneg %p40
        $region38: #{tpu_custom_call.1} parent=35 // pred_check_branch
          %200 = sbr.rel (%p198) target = $region40
        $region39: #{tpu_custom_call.1} parent=35 // pred_region
          %202 = dma.done %s194, 3072
        $region40: #{tpu_custom_call.1} parent=35 // pred_fallthru
          _
        // Predicated region
        $region41: #{tpu_custom_call.1} parent=35 // pred_check
          %p203 = pneg %p61
        $region42: #{tpu_custom_call.1} parent=35 // pred_check_branch
          %205 = sbr.rel (%p203) target = $region44
        $region43: #{tpu_custom_call.1} parent=35 // pred_region
          %207 = dma.done [#allocation6], 1024
        $region44: #{tpu_custom_call.1} parent=35 // pred_fallthru
          _
        %s208 = sand.u32 %s27, 1
        %s209 = scalar_lea.sflag [#allocation4], %s208
        %s210 = sand.u32 %s27, 1
        %s211 = smul.addr %s210, 192
        %s212 = scalar_lea.vmem [#allocation3], %s211
        %p213 = pneg %p40
        %p214 = pneg %p37
        %p215 = pneg %p61
        %p216 = pneg %p58
        %p217 = pneg %p82
        %p218 = pneg %p79
        %p219 = pneg %p103
        %p220 = pneg %p100
        %p221 = pneg %p124
        %p222 = pneg %p121
        %s223 = smul.u32 16, %s19
        %p224 = scmp.eq.s32.totalorder %s19, 0
        // Predicated region
        $region45: #{tpu_custom_call.1} parent=35 // pred_check
          %p225 = pneg %p224
        $region46: #{tpu_custom_call.1} parent=35 // pred_check_branch
          %227 = sbr.rel (%p225) target = $region48
        $region47: #{tpu_custom_call.1} parent=35 // pred_region
          %228 = vst [vmem:[#allocation2] sm:$0x7] 0.0
        $region48: #{tpu_custom_call.1} parent=35 // pred_fallthru
          _
        %v229 = vld [vmem:[%s197] sm:$0xff]
        %v230 = vld [vmem:[%s197 + $0x8] sm:$0xf]
        %v231 = vld [vmem:[%s197 + $0xc] sm:$0xff]
        %v232 = vld [vmem:[%s197 + $0x14] sm:$0xf]
        %v233 = vld [vmem:[%s197 + $0x18] sm:$0xff]
        %v234 = vld [vmem:[%s197 + $0x20] sm:$0xf]
        %v235 = vld [vmem:[%s197 + $0x24] sm:$0xff]
        %v236 = vld [vmem:[%s197 + $0x2c] sm:$0xf]
        %v237 = vld [vmem:[%s197 + $0x30] sm:$0xff]
        %v238 = vld [vmem:[%s197 + $0x38] sm:$0xf]
        %v239 = vld [vmem:[%s197 + $0x3c] sm:$0xff]
        %v240 = vld [vmem:[%s197 + $0x44] sm:$0xf]
        %v241 = vld [vmem:[%s197 + $0x48] sm:$0xff]
        %v242 = vld [vmem:[%s197 + $0x50] sm:$0xf]
        %v243 = vld [vmem:[%s197 + $0x54] sm:$0xff]
        %v244 = vld [vmem:[%s197 + $0x5c] sm:$0xf]
        %v245 = vld [vmem:[%s197 + $0x60] sm:$0xff]
        %v246 = vld [vmem:[%s197 + $0x68] sm:$0xf]
        %v247 = vld [vmem:[%s197 + $0x6c] sm:$0xff]
        %v248 = vld [vmem:[%s197 + $0x74] sm:$0xf]
        %v249 = vld [vmem:[%s197 + $0x78] sm:$0xff]
        %v250 = vld [vmem:[%s197 + $0x80] sm:$0xf]
        %v251 = vld [vmem:[%s197 + $0x84] sm:$0xff]
        %v252 = vld [vmem:[%s197 + $0x8c] sm:$0xf]
        %v253 = vld [vmem:[%s197 + $0x90] sm:$0xff]
        %v254 = vld [vmem:[%s197 + $0x98] sm:$0xf]
        %v255 = vld [vmem:[%s197 + $0x9c] sm:$0xff]
        %v256 = vld [vmem:[%s197 + $0xa4] sm:$0xf]
        %v257 = vld [vmem:[%s197 + $0xa8] sm:$0xff]
        %v258 = vld [vmem:[%s197 + $0xb0] sm:$0xf]
        %v259 = vld [vmem:[%s197 + $0xb4] sm:$0xff]
        %v260 = vld [vmem:[%s197 + $0xbc] sm:$0xf]
        %v261 = vld [vmem:[#allocation5] sm:$0xf]
        %v262 = vld [vmem:[#allocation5 + $0x4] sm:$0xf]
        %v263 = vld [vmem:[#allocation5 + $0x8] sm:$0xf]
        %v264 = vld [vmem:[#allocation5 + $0xc] sm:$0xf]
        %v265 = vld [vmem:[#allocation5 + $0x10] sm:$0xf]
        %v266 = vld [vmem:[#allocation5 + $0x14] sm:$0xf]
        %v267 = vld [vmem:[#allocation5 + $0x18] sm:$0xf]
        %v268 = vld [vmem:[#allocation5 + $0x1c] sm:$0xf]
        %v269 = vld [vmem:[#allocation5 + $0x20] sm:$0xf]
        %v270 = vld [vmem:[#allocation5 + $0x24] sm:$0xf]
        %v271 = vld [vmem:[#allocation5 + $0x28] sm:$0xf]
        %v272 = vld [vmem:[#allocation5 + $0x2c] sm:$0xf]
        %v273 = vld [vmem:[#allocation5 + $0x30] sm:$0xf]
        %v274 = vld [vmem:[#allocation5 + $0x34] sm:$0xf]
        %v275 = vld [vmem:[#allocation5 + $0x38] sm:$0xf]
        %v276 = vld [vmem:[#allocation5 + $0x3c] sm:$0xf]
        %v277 = vld [vmem:[%s2] sm:$0x1]
        %v278 = vlaneseq
        %v279 = vshrl.u32 %v278, 7
        %v280 = vadd.s32 %v279, 8
        %v281 = vadd.s32 %v279, 16
        %v282 = vadd.s32 %v279, 24
        %v283 = vadd.s32 %v279, 32
        %v284 = vadd.s32 %v279, 40
        %v285 = vadd.s32 %v279, 48
        %v286 = vadd.s32 %v279, 56
        %v287 = vadd.s32 %v279, 64
        %v288 = vadd.s32 %v279, 72
        %v289 = vadd.s32 %v279, 80
        %v290 = vadd.s32 %v279, 88
        %v291 = vadd.s32 %v279, 96
        %v292 = vadd.s32 %v279, 104
        %v293 = vadd.s32 %v279, 112
        %v294 = vadd.s32 %v279, 120
        %s295 = smul.u32 %s19, 128
        %v296 = vstv %s295
        %v297 = vadd.s32 %v279, %v296
        %v298 = vadd.s32 %v280, %v296
        %v299 = vadd.s32 %v281, %v296
        %v300 = vadd.s32 %v282, %v296
        %v301 = vadd.s32 %v283, %v296
        %v302 = vadd.s32 %v284, %v296
        %v303 = vadd.s32 %v285, %v296
        %v304 = vadd.s32 %v286, %v296
        %v305 = vadd.s32 %v287, %v296
        %v306 = vadd.s32 %v288, %v296
        %v307 = vadd.s32 %v289, %v296
        %v308 = vadd.s32 %v290, %v296
        %v309 = vadd.s32 %v291, %v296
        %v310 = vadd.s32 %v292, %v296
        %v311 = vadd.s32 %v293, %v296
        %v312 = vadd.s32 %v294, %v296
        %vm313 = vcmp.lt.s32.totalorder %v297, 300
        %vm314 = vcmp.lt.s32.totalorder %v298, 300
        %vm315 = vcmp.lt.s32.totalorder %v299, 300
        %vm316 = vcmp.lt.s32.totalorder %v300, 300
        %vm317 = vcmp.lt.s32.totalorder %v301, 300
        %vm318 = vcmp.lt.s32.totalorder %v302, 300
        %vm319 = vcmp.lt.s32.totalorder %v303, 300
        %vm320 = vcmp.lt.s32.totalorder %v304, 300
        %vm321 = vcmp.lt.s32.totalorder %v305, 300
        %vm322 = vcmp.lt.s32.totalorder %v306, 300
        %vm323 = vcmp.lt.s32.totalorder %v307, 300
        %vm324 = vcmp.lt.s32.totalorder %v308, 300
        %vm325 = vcmp.lt.s32.totalorder %v309, 300
        %vm326 = vcmp.lt.s32.totalorder %v310, 300
        %vm327 = vcmp.lt.s32.totalorder %v311, 300
        %vm328 = vcmp.lt.s32.totalorder %v312, 300
        %v329 = vsel %vm313, 1, 0
        %v330 = vsel %vm314, 1, 0
        %v331 = vsel %vm315, 1, 0
        %v332 = vsel %vm316, 1, 0
        %v333 = vsel %vm317, 1, 0
        %v334 = vsel %vm318, 1, 0
        %v335 = vsel %vm319, 1, 0
        %v336 = vsel %vm320, 1, 0
        %v337 = vsel %vm321, 1, 0
        %v338 = vsel %vm322, 1, 0
        %v339 = vsel %vm323, 1, 0
        %v340 = vsel %vm324, 1, 0
        %v341 = vsel %vm325, 1, 0
        %v342 = vsel %vm326, 1, 0
        %v343 = vsel %vm327, 1, 0
        %v344 = vsel %vm328, 1, 0
        %v345 = vcvt.s32.f32 %v329
        %v346 = vcvt.s32.f32 %v330
        %v347 = vcvt.s32.f32 %v331
        %v348 = vcvt.s32.f32 %v332
        %v349 = vcvt.s32.f32 %v333
        %v350 = vcvt.s32.f32 %v334
        %v351 = vcvt.s32.f32 %v335
        %v352 = vcvt.s32.f32 %v336
        %v353 = vcvt.s32.f32 %v337
        %v354 = vcvt.s32.f32 %v338
        %v355 = vcvt.s32.f32 %v339
        %v356 = vcvt.s32.f32 %v340
        %v357 = vcvt.s32.f32 %v341
        %v358 = vcvt.s32.f32 %v342
        %v359 = vcvt.s32.f32 %v343
        %v360 = vcvt.s32.f32 %v344
        %v362 = vperm.slane %v277, 0
        %v380 = vunpack.c.l.b16 %v229
        %v381 = vunpack.c.l.b16 %v231
        %v382 = vunpack.c.l.b16 %v233
        %v383 = vunpack.c.l.b16 %v235
        %v384 = vunpack.c.l.b16 %v237
        %v385 = vunpack.c.l.b16 %v239
        %v386 = vunpack.c.l.b16 %v241
        %v387 = vunpack.c.l.b16 %v243
        %v388 = vunpack.c.l.b16 %v245
        %v389 = vunpack.c.l.b16 %v247
        %v390 = vunpack.c.l.b16 %v249
        %v391 = vunpack.c.l.b16 %v251
        %v392 = vunpack.c.l.b16 %v253
        %v393 = vunpack.c.l.b16 %v255
        %v394 = vunpack.c.l.b16 %v257
        %v395 = vunpack.c.l.b16 %v259
        %v396 = vpack.c.b16 %v381, %v380
        %v397 = vpack.c.b16 %v383, %v382
        %v398 = vpack.c.b16 %v385, %v384
        %v399 = vpack.c.b16 %v387, %v386
        %v400 = vpack.c.b16 %v389, %v388
        %v401 = vpack.c.b16 %v391, %v390
        %v402 = vpack.c.b16 %v393, %v392
        %v403 = vpack.c.b16 %v395, %v394
        %v428 = vunpack.c.l.b16 %v261
        %v429 = vunpack.c.l.b16 %v262
        %v430 = vunpack.c.l.b16 %v263
        %v431 = vunpack.c.l.b16 %v264
        %v432 = vunpack.c.l.b16 %v265
        %v433 = vunpack.c.l.b16 %v266
        %v434 = vunpack.c.l.b16 %v267
        %v435 = vunpack.c.l.b16 %v268
        %v436 = vunpack.c.l.b16 %v269
        %v437 = vunpack.c.l.b16 %v270
        %v438 = vunpack.c.l.b16 %v271
        %v439 = vunpack.c.l.b16 %v272
        %v440 = vunpack.c.l.b16 %v273
        %v441 = vunpack.c.l.b16 %v274
        %v442 = vunpack.c.l.b16 %v275
        %v443 = vunpack.c.l.b16 %v276
        %v444 = vpack.c.b16 %v429, %v428
        %v445 = vpack.c.b16 %v431, %v430
        %v446 = vpack.c.b16 %v433, %v432
        %v447 = vpack.c.b16 %v435, %v434
        %v448 = vpack.c.b16 %v437, %v436
        %v449 = vpack.c.b16 %v439, %v438
        %v450 = vpack.c.b16 %v441, %v440
        %v451 = vpack.c.b16 %v443, %v442
        %460 = vmatpush.bf16.msra.mxu0 %v451
        %461 = vmatpush.bf16.msra.mxu0 %v450
        %462 = vmatpush.bf16.msra.mxu0 %v449
        %463 = vmatpush.bf16.msra.mxu0 %v448
        %464 = vmatpush.bf16.msra.mxu0 %v447
        %465 = vmatpush.bf16.msra.mxu0 %v446
        %466 = vmatpush.bf16.msra.mxu0 %v445
        %467 = vmatpush.bf16.msra.mxu0 %v444
        %468 = vmatmul.bf16.gmra.mxu0 %v396
        %v469 = vpop.f32.mrf.mxu0
        %v470 = vadd.f32 %v362, %v469
        %v471 = vpop.f32.mrf.mxu0
        %v472 = vadd.f32 %v362, %v471
        %473 = vmatmul.bf16.gmra.mxu0 %v397
        %v474 = vpop.f32.mrf.mxu0
        %v475 = vadd.f32 %v362, %v474
        %v476 = vpop.f32.mrf.mxu0
        %v477 = vadd.f32 %v362, %v476
        %478 = vmatmul.bf16.gmra.mxu0 %v398
        %v479 = vpop.f32.mrf.mxu0
        %v480 = vadd.f32 %v362, %v479
        %v481 = vpop.f32.mrf.mxu0
        %v482 = vadd.f32 %v362, %v481
        %483 = vmatmul.bf16.gmra.mxu0 %v399
        %v484 = vpop.f32.mrf.mxu0
        %v485 = vadd.f32 %v362, %v484
        %v486 = vpop.f32.mrf.mxu0
        %v487 = vadd.f32 %v362, %v486
        %488 = vmatmul.bf16.gmra.mxu0 %v400
        %v489 = vpop.f32.mrf.mxu0
        %v490 = vadd.f32 %v362, %v489
        %v491 = vpop.f32.mrf.mxu0
        %v492 = vadd.f32 %v362, %v491
        %493 = vmatmul.bf16.gmra.mxu0 %v401
        %v494 = vpop.f32.mrf.mxu0
        %v495 = vadd.f32 %v362, %v494
        %v496 = vpop.f32.mrf.mxu0
        %v497 = vadd.f32 %v362, %v496
        %498 = vmatmul.bf16.gmra.mxu0 %v402
        %v499 = vpop.f32.mrf.mxu0
        %v500 = vadd.f32 %v362, %v499
        %v501 = vpop.f32.mrf.mxu0
        %v502 = vadd.f32 %v362, %v501
        %503 = vmatmul.bf16.gmra.mxu0 %v403
        %v504 = vpop.f32.mrf.mxu0
        %v505 = vadd.f32 %v362, %v504
        %v506 = vpop.f32.mrf.mxu0
        %v507 = vadd.f32 %v362, %v506
        %508 = vdwg.mxu0
        %v509 = vtanh.pop %v470
        %v510 = vtanh.pop %v472
        %v511 = vtanh.pop %v475
        %v512 = vtanh.pop %v477
        %v513 = vtanh.pop %v480
        %v514 = vtanh.pop %v482
        %v515 = vtanh.pop %v485
        %v516 = vtanh.pop %v487
        %v517 = vtanh.pop %v490
        %v518 = vtanh.pop %v492
        %v519 = vtanh.pop %v495
        %v520 = vtanh.pop %v497
        %v521 = vtanh.pop %v500
        %v522 = vtanh.pop %v502
        %v523 = vtanh.pop %v505
        %v524 = vtanh.pop %v507
        %v525 = vmul.f32 %v509, %v345
        %v526 = vmul.f32 %v510, %v346
        %v527 = vmul.f32 %v511, %v347
        %v528 = vmul.f32 %v512, %v348
        %v529 = vmul.f32 %v513, %v349
        %v530 = vmul.f32 %v514, %v350
        %v531 = vmul.f32 %v515, %v351
        %v532 = vmul.f32 %v516, %v352
        %v533 = vmul.f32 %v517, %v353
        %v534 = vmul.f32 %v518, %v354
        %v535 = vmul.f32 %v519, %v355
        %v536 = vmul.f32 %v520, %v356
        %v537 = vmul.f32 %v521, %v357
        %v538 = vmul.f32 %v522, %v358
        %v539 = vmul.f32 %v523, %v359
        %v540 = vmul.f32 %v524, %v360
        %v541 = vld [vmem:[#allocation2] sm:$0x1]
        %v542 = vadd.f32 %v525, %v526
        %v543 = vadd.f32 %v542, %v527
        %v544 = vadd.f32 %v543, %v528
        %v545 = vadd.f32 %v544, %v529
        %v546 = vadd.f32 %v545, %v530
        %v547 = vadd.f32 %v546, %v531
        %v548 = vadd.f32 %v547, %v532
        %v549 = vadd.f32 %v548, %v533
        %v550 = vadd.f32 %v549, %v534
        %v551 = vadd.f32 %v550, %v535
        %v552 = vadd.f32 %v551, %v536
        %v553 = vadd.f32 %v552, %v537
        %v554 = vadd.f32 %v553, %v538
        %v555 = vadd.f32 %v554, %v539
        %v556 = vadd.f32 %v555, %v540
        %v557 = vrot.slane %v556, 4
        %v558 = vadd.f32 %v556, %v557
        %v559 = vrot.slane %v558, 2
        %v560 = vadd.f32 %v558, %v559
        %v561 = vrot.slane %v560, 1
        %v562 = vadd.f32 %v560, %v561
        %v563 = vadd.f32 %v541, %v562
        %564 = vst [vmem:[#allocation2] sm:$0x1] %v563
        %v565 = vunpack.c.h.b16 %v229
        %v566 = vunpack.c.h.b16 %v231
        %v567 = vunpack.c.h.b16 %v233
        %v568 = vunpack.c.h.b16 %v235
        %v569 = vunpack.c.h.b16 %v237
        %v570 = vunpack.c.h.b16 %v239
        %v571 = vunpack.c.h.b16 %v241
        %v572 = vunpack.c.h.b16 %v243
        %v573 = vunpack.c.h.b16 %v245
        %v574 = vunpack.c.h.b16 %v247
        %v575 = vunpack.c.h.b16 %v249
        %v576 = vunpack.c.h.b16 %v251
        %v577 = vunpack.c.h.b16 %v253
        %v578 = vunpack.c.h.b16 %v255
        %v579 = vunpack.c.h.b16 %v257
        %v580 = vunpack.c.h.b16 %v259
        %v581 = vpack.c.b16 %v566, %v565
        %v582 = vpack.c.b16 %v568, %v567
        %v583 = vpack.c.b16 %v570, %v569
        %v584 = vpack.c.b16 %v572, %v571
        %v585 = vpack.c.b16 %v574, %v573
        %v586 = vpack.c.b16 %v576, %v575
        %v587 = vpack.c.b16 %v578, %v577
        %v588 = vpack.c.b16 %v580, %v579
        %597 = vmatpush.bf16.msra.mxu0 %v451
        %598 = vmatpush.bf16.msra.mxu0 %v450
        %599 = vmatpush.bf16.msra.mxu0 %v449
        %600 = vmatpush.bf16.msra.mxu0 %v448
        %601 = vmatpush.bf16.msra.mxu0 %v447
        %602 = vmatpush.bf16.msra.mxu0 %v446
        %603 = vmatpush.bf16.msra.mxu0 %v445
        %604 = vmatpush.bf16.msra.mxu0 %v444
        %605 = vmatmul.bf16.gmra.mxu0 %v581
        %v606 = vpop.f32.mrf.mxu0
        %v607 = vadd.f32 %v362, %v606
        %v608 = vpop.f32.mrf.mxu0
        %v609 = vadd.f32 %v362, %v608
        %610 = vmatmul.bf16.gmra.mxu0 %v582
        %v611 = vpop.f32.mrf.mxu0
        %v612 = vadd.f32 %v362, %v611
        %v613 = vpop.f32.mrf.mxu0
        %v614 = vadd.f32 %v362, %v613
        %615 = vmatmul.bf16.gmra.mxu0 %v583
        %v616 = vpop.f32.mrf.mxu0
        %v617 = vadd.f32 %v362, %v616
        %v618 = vpop.f32.mrf.mxu0
        %v619 = vadd.f32 %v362, %v618
        %620 = vmatmul.bf16.gmra.mxu0 %v584
        %v621 = vpop.f32.mrf.mxu0
        %v622 = vadd.f32 %v362, %v621
        %v623 = vpop.f32.mrf.mxu0
        %v624 = vadd.f32 %v362, %v623
        %625 = vmatmul.bf16.gmra.mxu0 %v585
        %v626 = vpop.f32.mrf.mxu0
        %v627 = vadd.f32 %v362, %v626
        %v628 = vpop.f32.mrf.mxu0
        %v629 = vadd.f32 %v362, %v628
        %630 = vmatmul.bf16.gmra.mxu0 %v586
        %v631 = vpop.f32.mrf.mxu0
        %v632 = vadd.f32 %v362, %v631
        %v633 = vpop.f32.mrf.mxu0
        %v634 = vadd.f32 %v362, %v633
        %635 = vmatmul.bf16.gmra.mxu0 %v587
        %v636 = vpop.f32.mrf.mxu0
        %v637 = vadd.f32 %v362, %v636
        %v638 = vpop.f32.mrf.mxu0
        %v639 = vadd.f32 %v362, %v638
        %640 = vmatmul.bf16.gmra.mxu0 %v588
        %v641 = vpop.f32.mrf.mxu0
        %v642 = vadd.f32 %v362, %v641
        %v643 = vpop.f32.mrf.mxu0
        %v644 = vadd.f32 %v362, %v643
        %645 = vdwg.mxu0
        %v646 = vtanh.pop %v607
        %v647 = vtanh.pop %v609
        %v648 = vtanh.pop %v612
        %v649 = vtanh.pop %v614
        %v650 = vtanh.pop %v617
        %v651 = vtanh.pop %v619
        %v652 = vtanh.pop %v622
        %v653 = vtanh.pop %v624
        %v654 = vtanh.pop %v627
        %v655 = vtanh.pop %v629
        %v656 = vtanh.pop %v632
        %v657 = vtanh.pop %v634
        %v658 = vtanh.pop %v637
        %v659 = vtanh.pop %v639
        %v660 = vtanh.pop %v642
        %v661 = vtanh.pop %v644
        %v662 = vmul.f32 %v646, %v345
        %v663 = vmul.f32 %v647, %v346
        %v664 = vmul.f32 %v648, %v347
        %v665 = vmul.f32 %v649, %v348
        %v666 = vmul.f32 %v650, %v349
        %v667 = vmul.f32 %v651, %v350
        %v668 = vmul.f32 %v652, %v351
        %v669 = vmul.f32 %v653, %v352
        %v670 = vmul.f32 %v654, %v353
        %v671 = vmul.f32 %v655, %v354
        %v672 = vmul.f32 %v656, %v355
        %v673 = vmul.f32 %v657, %v356
        %v674 = vmul.f32 %v658, %v357
        %v675 = vmul.f32 %v659, %v358
        %v676 = vmul.f32 %v660, %v359
        %v677 = vmul.f32 %v661, %v360
        %v678 = vld [vmem:[#allocation2 + $0x1] sm:$0x1]
        %v679 = vadd.f32 %v662, %v663
        %v680 = vadd.f32 %v679, %v664
        %v681 = vadd.f32 %v680, %v665
        %v682 = vadd.f32 %v681, %v666
        %v683 = vadd.f32 %v682, %v667
        %v684 = vadd.f32 %v683, %v668
        %v685 = vadd.f32 %v684, %v669
        %v686 = vadd.f32 %v685, %v670
        %v687 = vadd.f32 %v686, %v671
        %v688 = vadd.f32 %v687, %v672
        %v689 = vadd.f32 %v688, %v673
        %v690 = vadd.f32 %v689, %v674
        %v691 = vadd.f32 %v690, %v675
        %v692 = vadd.f32 %v691, %v676
        %v693 = vadd.f32 %v692, %v677
        %v694 = vrot.slane %v693, 4
        %v695 = vadd.f32 %v693, %v694
        %v696 = vrot.slane %v695, 2
        %v697 = vadd.f32 %v695, %v696
        %v698 = vrot.slane %v697, 1
        %v699 = vadd.f32 %v697, %v698
        %v700 = vadd.f32 %v678, %v699
        %701 = vst [vmem:[#allocation2 + $0x1] sm:$0x1] %v700
        %v718 = vunpack.c.l.b16 %v230
        %v719 = vunpack.c.l.b16 %v232
        %v720 = vunpack.c.l.b16 %v234
        %v721 = vunpack.c.l.b16 %v236
        %v722 = vunpack.c.l.b16 %v238
        %v723 = vunpack.c.l.b16 %v240
        %v724 = vunpack.c.l.b16 %v242
        %v725 = vunpack.c.l.b16 %v244
        %v726 = vunpack.c.l.b16 %v246
        %v727 = vunpack.c.l.b16 %v248
        %v728 = vunpack.c.l.b16 %v250
        %v729 = vunpack.c.l.b16 %v252
        %v730 = vunpack.c.l.b16 %v254
        %v731 = vunpack.c.l.b16 %v256
        %v732 = vunpack.c.l.b16 %v258
        %v733 = vunpack.c.l.b16 %v260
        %v734 = vpack.c.b16 %v719, %v718
        %v735 = vpack.c.b16 %v721, %v720
        %v736 = vpack.c.b16 %v723, %v722
        %v737 = vpack.c.b16 %v725, %v724
        %v738 = vpack.c.b16 %v727, %v726
        %v739 = vpack.c.b16 %v729, %v728
        %v740 = vpack.c.b16 %v731, %v730
        %v741 = vpack.c.b16 %v733, %v732
        %750 = vmatpush.bf16.msra.mxu0 %v451
        %751 = vmatpush.bf16.msra.mxu0 %v450
        %752 = vmatpush.bf16.msra.mxu0 %v449
        %753 = vmatpush.bf16.msra.mxu0 %v448
        %754 = vmatpush.bf16.msra.mxu0 %v447
        %755 = vmatpush.bf16.msra.mxu0 %v446
        %756 = vmatpush.bf16.msra.mxu0 %v445
        %757 = vmatpush.bf16.msra.mxu0 %v444
        %758 = vmatmul.bf16.gmra.mxu0 %v734
        %v759 = vpop.f32.mrf.mxu0
        %v760 = vadd.f32 %v362, %v759
        %v761 = vpop.f32.mrf.mxu0
        %v762 = vadd.f32 %v362, %v761
        %763 = vmatmul.bf16.gmra.mxu0 %v735
        %v764 = vpop.f32.mrf.mxu0
        %v765 = vadd.f32 %v362, %v764
        %v766 = vpop.f32.mrf.mxu0
        %v767 = vadd.f32 %v362, %v766
        %768 = vmatmul.bf16.gmra.mxu0 %v736
        %v769 = vpop.f32.mrf.mxu0
        %v770 = vadd.f32 %v362, %v769
        %v771 = vpop.f32.mrf.mxu0
        %v772 = vadd.f32 %v362, %v771
        %773 = vmatmul.bf16.gmra.mxu0 %v737
        %v774 = vpop.f32.mrf.mxu0
        %v775 = vadd.f32 %v362, %v774
        %v776 = vpop.f32.mrf.mxu0
        %v777 = vadd.f32 %v362, %v776
        %778 = vmatmul.bf16.gmra.mxu0 %v738
        %v779 = vpop.f32.mrf.mxu0
        %v780 = vadd.f32 %v362, %v779
        %v781 = vpop.f32.mrf.mxu0
        %v782 = vadd.f32 %v362, %v781
        %783 = vmatmul.bf16.gmra.mxu0 %v739
        %v784 = vpop.f32.mrf.mxu0
        %v785 = vadd.f32 %v362, %v784
        %v786 = vpop.f32.mrf.mxu0
        %v787 = vadd.f32 %v362, %v786
        %788 = vmatmul.bf16.gmra.mxu0 %v740
        %v789 = vpop.f32.mrf.mxu0
        %v790 = vadd.f32 %v362, %v789
        %v791 = vpop.f32.mrf.mxu0
        %v792 = vadd.f32 %v362, %v791
        %793 = vmatmul.bf16.gmra.mxu0 %v741
        %v794 = vpop.f32.mrf.mxu0
        %v795 = vadd.f32 %v362, %v794
        %v796 = vpop.f32.mrf.mxu0
        %v797 = vadd.f32 %v362, %v796
        %798 = vdwg.mxu0
        %v799 = vtanh.pop %v760
        %v800 = vtanh.pop %v762
        %v801 = vtanh.pop %v765
        %v802 = vtanh.pop %v767
        %v803 = vtanh.pop %v770
        %v804 = vtanh.pop %v772
        %v805 = vtanh.pop %v775
        %v806 = vtanh.pop %v777
        %v807 = vtanh.pop %v780
        %v808 = vtanh.pop %v782
        %v809 = vtanh.pop %v785
        %v810 = vtanh.pop %v787
        %v811 = vtanh.pop %v790
        %v812 = vtanh.pop %v792
        %v813 = vtanh.pop %v795
        %v814 = vtanh.pop %v797
        %v815 = vmul.f32 %v799, %v345
        %v816 = vmul.f32 %v800, %v346
        %v817 = vmul.f32 %v801, %v347
        %v818 = vmul.f32 %v802, %v348
        %v819 = vmul.f32 %v803, %v349
        %v820 = vmul.f32 %v804, %v350
        %v821 = vmul.f32 %v805, %v351
        %v822 = vmul.f32 %v806, %v352
        %v823 = vmul.f32 %v807, %v353
        %v824 = vmul.f32 %v808, %v354
        %v825 = vmul.f32 %v809, %v355
        %v826 = vmul.f32 %v810, %v356
        %v827 = vmul.f32 %v811, %v357
        %v828 = vmul.f32 %v812, %v358
        %v829 = vmul.f32 %v813, %v359
        %v830 = vmul.f32 %v814, %v360
        %v831 = vld [vmem:[#allocation2 + $0x2] sm:$0x1]
        %v832 = vadd.f32 %v815, %v816
        %v833 = vadd.f32 %v832, %v817
        %v834 = vadd.f32 %v833, %v818
        %v835 = vadd.f32 %v834, %v819
        %v836 = vadd.f32 %v835, %v820
        %v837 = vadd.f32 %v836, %v821
        %v838 = vadd.f32 %v837, %v822
        %v839 = vadd.f32 %v838, %v823
        %v840 = vadd.f32 %v839, %v824
        %v841 = vadd.f32 %v840, %v825
        %v842 = vadd.f32 %v841, %v826
        %v843 = vadd.f32 %v842, %v827
        %v844 = vadd.f32 %v843, %v828
        %v845 = vadd.f32 %v844, %v829
        %v846 = vadd.f32 %v845, %v830
        %v847 = vrot.slane %v846, 4
        %v848 = vadd.f32 %v846, %v847
        %v849 = vrot.slane %v848, 2
        %v850 = vadd.f32 %v848, %v849
        %v851 = vrot.slane %v850, 1
        %v852 = vadd.f32 %v850, %v851
        %v853 = vadd.f32 %v831, %v852
        %854 = vst [vmem:[#allocation2 + $0x2] sm:$0x1] %v853
        %p855 = scmp.eq.s32.totalorder %s19, 2
        // Predicated region
        $region49: #{tpu_custom_call.1} parent=35 // pred_check
          %p856 = pneg %p855
        $region50: #{tpu_custom_call.1} parent=35 // pred_check_branch
          %858 = sbr.rel (%p856) target = $region52
        $region51: #{tpu_custom_call.1} parent=35 // pred_region
          %v859 = vld [vmem:[%s3] sm:$0x1]
          %v860 = vld [vmem:[#allocation2] sm:$0x7]
          %v862 = vperm.slane %v859, 0
          %v864 = vmul.f32 %v860, %v862
          %vm865 = vcmask 1042432
          %v866 = vsel %vm865, %v864, 0.0
          %867 = vadd.xlane.f32.xlu0 %v866
          %v868 = vpop.xlane.xlu0 %867
          %v869 = vmul.f32 %v868, 0.0033333334
          %v870 = vsel %vm865, %v869, -inf
          %v871 = vrot.slane %v870, 4
          %v872 = vmax.f32 %v870, %v871
          %v873 = vrot.slane %v872, 2
          %v874 = vmax.f32 %v872, %v873
          %v875 = vrot.slane %v874, 1
          %v876 = vmax.f32 %v874, %v875
          %v877 = vsub.f32 %v869, %v876
          %v878 = vmul.f32 %v877, 1.442695
          %v879 = vpow.pop %v878
          %v880 = vsel %vm865, %v879, 0.0
          %v881 = vrot.slane %v880, 4
          %v882 = vadd.f32 %v880, %v881
          %v883 = vrot.slane %v882, 2
          %v884 = vadd.f32 %v882, %v883
          %v885 = vrot.slane %v884, 1
          %v886 = vadd.f32 %v884, %v885
          %v887 = vrcp.pop %v886
          %v888 = vmul.f32 %v886, %v887
          %v889 = vsub.f32 1.0, %v888
          %v890 = vmul.f32 %v887, %v889
          %v891 = vadd.f32 %v887, %v890
          %vm892 = vweird.f32 %v886
          %vm893 = vweird.f32 %v887
          %vm894 = vmor %vm892, %vm893
          %v895 = vsel %vm894, %v887, %v891
          %v896 = vand.u32 2147483647, %v886
          %vm897 = vcmp.eq.f32.partialorder %v896, 8.507059e+37
          %v898 = vand.u32 %v886, 2147483648
          %v899 = vor.u32 1.1754944e-38, %v898
          %v900 = vsel %vm897, %v899, %v895
          %v901 = vmul.f32 %v879, %v900
          %vm902 = vcmask 2048
          %903 = vst.msk [vmem:[%s4] sm:$0x7] %vm902, %v901
        $region52: #{tpu_custom_call.1} parent=35 // pred_fallthru
          _
        // Predicated region
        $region53: #{tpu_custom_call.1} parent=35 // pred_check
          %p904 = pneg %p121
        $region54: #{tpu_custom_call.1} parent=35 // pred_check_branch
          %906 = sbr.rel (%p904) target = $region56
        $region55: #{tpu_custom_call.1} parent=35 // pred_region
          _
        $region56: #{tpu_custom_call.1} parent=35 // pred_fallthru
          _
        // Predicated region
        $region57: #{tpu_custom_call.1} parent=35 // pred_check
          %p907 = pneg %p121
        $region58: #{tpu_custom_call.1} parent=35 // pred_check_branch
          %909 = sbr.rel (%p907) target = $region60
        $region59: #{tpu_custom_call.1} parent=35 // pred_region
          _
        $region60: #{tpu_custom_call.1} parent=35 // pred_fallthru
          _
      $region36: #{tpu_custom_call.1} parent=5 // pred_fallthru
        _
      %p910 = scmp.le.s32.totalorder 2, %s14
      // Predicated region
      $region61: #{tpu_custom_call.1} parent=5 // pred_check
        %p911 = pneg %p910
      $region62: #{tpu_custom_call.1} parent=5 // pred_check_branch
        %913 = sbr.rel (%p911) target = $region64
      $region63: #{tpu_custom_call.1} parent=5 // pred_region
        %s914 = ssub.s32 %s14, 2
      $region64: #{tpu_custom_call.1} parent=5 // pred_fallthru
        _
    $region6: #{tpu_custom_call.1} parent=1 // loop_footer
      %s18 = sadd.s32 1, %s14
    $region7: #{tpu_custom_call.1} parent=1 // loop_footer_branch
      %13 = sbr.rel target = $region3
    $region8: #{tpu_custom_call.1} parent=1 // loop_exit
      _
    %915 = vsyncpa [#allocation4], 1
    %s916 = scalar_lea.sflag [#allocation4], 1
    %917 = vsyncpa %s916, 1
    %918 = vsyncpa [#allocation6], 1

</llo_original>
